<compile_context>
chip_gen: v7x
topology: tpu7x:2x2x1
jax: 0.10.0
libtpu: 0.0.40
codegen_flags: <defaults>
</compile_context>

<pallas_src>
import functools

import jax
import jax.numpy as jnp
from jax.experimental import pallas as pl
from jax.experimental.pallas import tpu as pltpu

EPS = 1e-5
LANE = 128
SUBLANE_F32 = 8
SUBLANE_BF16 = 16   # bf16 packs 16 sublanes per vreg


def _round_up(x, m):
    return (x + m - 1) // m * m


def mlp_decoder_kernel(x_ref, w_ref, vec_ref, out_ref, *,
                       in_dim, hidden_dim, out_dim, binary, r1, r2, r3):
    """x_ref: (N, in_dim) bf16; w_ref: packed bf16 weight slab; vec_ref: packed f32
    vector slab; out_ref: (N, binary) f32."""
    n = x_ref.shape[0]
    inv_n = 1.0 / n

    def vrow(r, width):
        # Static ref-view slice of one packed vector row -> (1, width) f32.
        return vec_ref[r:r + 1, :width]

    def linear_relu_bn(x_mxu, w_mxu, b, g, be):
        # MXU matmul in bf16, f32 accumulation; BN/ReLU elementwise math in f32.
        h = jnp.dot(x_mxu, w_mxu, preferred_element_type=jnp.float32) + b
        h = jnp.maximum(h, 0.0)
        # Two-pass batch statistics (avoids sumsq - mean^2 cancellation).
        mean = jnp.sum(h, axis=0, keepdims=True) * inv_n
        c = h - mean
        var = jnp.sum(c * c, axis=0, keepdims=True) * inv_n
        scale = jax.lax.rsqrt(var + EPS) * g
        return c * scale + be

    # Packed vector slab rows:
    #   0..2 : b1, g1, be1   (hidden_dim wide)
    #   3..5 : b2, g2, be2   (hidden_dim wide)
    #   6..8 : b3, g3, be3   (out_dim wide)
    #   9    : b4            (binary wide)
    #   10.. : fc4 weights (layout depends on `binary`, see wrapper)
    x = x_ref[...]                                     # bf16
    h = linear_relu_bn(x, w_ref[r1:r1 + in_dim, :hidden_dim],
                       vrow(0, hidden_dim), vrow(1, hidden_dim), vrow(2, hidden_dim))
    h = linear_relu_bn(h.astype(jnp.bfloat16), w_ref[r2:r2 + hidden_dim, :hidden_dim],
                       vrow(3, hidden_dim), vrow(4, hidden_dim), vrow(5, hidden_dim))
    h = linear_relu_bn(h.astype(jnp.bfloat16), w_ref[r3:r3 + hidden_dim, :out_dim],
                       vrow(6, out_dim), vrow(7, out_dim), vrow(8, out_dim))

    if binary <= 2:
        # Tiny head: per-output-column broadcast-multiply + lane reduce on VPU/XLU,
        # avoids a degenerate 1-wide MXU matmul.
        cols = []
        for j in range(binary):
            w4j = vec_ref[10 + j:11 + j, :out_dim]     # (1, out_dim)
            b4j = vec_ref[9:10, j:j + 1]               # (1, 1)
            cols.append(jnp.sum(h * w4j, axis=-1, keepdims=True) + b4j)
        out = cols[0] if binary == 1 else jnp.concatenate(cols, axis=-1)
    else:
        # Wider head: one MXU matmul against the w4 block stored in the slab.
        w4 = vec_ref[10:10 + out_dim, :binary]         # (out_dim, binary)
        out = jnp.dot(h, w4, preferred_element_type=jnp.float32) + vrow(9, binary)

    out_ref[...] = out.astype(out_ref.dtype)


@jax.jit
def mlp_decoder(x, params):
    (w1, b1, g1, be1, w2, b2, g2, be2, w3, b3, g3, be3, w4, b4) = params
    n, in_dim = x.shape
    hidden_dim = w1.shape[1]
    out_dim = w3.shape[1]
    binary = w4.shape[1]
    lane_pad = _round_up(max(hidden_dim, out_dim, binary, LANE), LANE)

    def put(slab, r, m):
        return jax.lax.dynamic_update_slice(slab, m.astype(slab.dtype), (r, 0))

    # ---- bf16 weight slab: w1 / w2 / w3 stacked along sublanes (16-aligned rows) ----
    r1 = 0
    r2 = _round_up(in_dim, SUBLANE_BF16)
    r3 = r2 + _round_up(hidden_dim, SUBLANE_BF16)
    w_rows = _round_up(r3 + _round_up(hidden_dim, SUBLANE_BF16), SUBLANE_BF16)
    w_slab = jnp.zeros((w_rows, lane_pad), jnp.bfloat16)
    w_slab = put(w_slab, r1, w1)
    w_slab = put(w_slab, r2, w2)
    w_slab = put(w_slab, r3, w3)

    # ---- f32 vector slab: biases / gammas / betas / fc4 ----
    v_rows_needed = 10 + (binary if binary <= 2 else out_dim)
    v_rows = _round_up(v_rows_needed, SUBLANE_F32)
    vecs = jnp.zeros((v_rows, lane_pad), jnp.float32)
    for r, v in enumerate((b1, g1, be1, b2, g2, be2, b3, g3, be3, b4)):
        vecs = put(vecs, r, jnp.reshape(v, (1, -1)))
    if binary <= 2:
        for j in range(binary):
            vecs = put(vecs, 10 + j, jnp.reshape(w4[:, j], (1, -1)))   # w4^T rows
    else:
        vecs = put(vecs, 10, w4)                                       # w4 as a block

    x_bf16 = x.astype(jnp.bfloat16)

    # Explicit VMEM budget from actual buffer sizes + headroom.
    vmem_bytes = 4 * (x_bf16.size * 2 + w_slab.size * 2 + vecs.size * 4
                      + 3 * n * lane_pad * 4 + n * binary * 4) + (1 << 20)
    vmem_bytes = int(min(max(vmem_bytes, 1 << 20), 100 << 20))

    full = lambda a: pl.BlockSpec(a.shape, lambda: tuple(0 for _ in a.shape),
                                  memory_space=pltpu.MemorySpace.VMEM)

    kernel = functools.partial(
        mlp_decoder_kernel, in_dim=in_dim, hidden_dim=hidden_dim,
        out_dim=out_dim, binary=binary, r1=r1, r2=r2, r3=r3)

    return pl.pallas_call(
        kernel,
        out_shape=jax.ShapeDtypeStruct((n, binary), jnp.float32),
        grid=(),
        in_specs=[full(x_bf16), full(w_slab), full(vecs)],
        out_specs=pl.BlockSpec((n, binary), lambda: (0, 0),
                               memory_space=pltpu.MemorySpace.VMEM),
        compiler_params=pltpu.CompilerParams(vmem_limit_bytes=vmem_bytes),
    )(x_bf16, w_slab, vecs)


def init_params(key, in_dim, hidden_dim, out_dim, binary=1):
    """Deterministic init mirroring nn.Linear's U(-1/sqrt(fan_in), 1/sqrt(fan_in));
    BatchNorm gamma=1, beta=0. Linear weights stored as (in, out) so y = x @ W + b."""
    def linear(k, fan_in, fan_out):
        kw, kb = jax.random.split(k)
        bound = 1.0 / jnp.sqrt(fan_in)
        w = jax.random.uniform(kw, (fan_in, fan_out), jnp.float32, -bound, bound)
        b = jax.random.uniform(kb, (1, fan_out), jnp.float32, -bound, bound)
        return w, b

    k1, k2, k3, k4 = jax.random.split(key, 4)
    w1, b1 = linear(k1, in_dim, hidden_dim)
    w2, b2 = linear(k2, hidden_dim, hidden_dim)
    w3, b3 = linear(k3, hidden_dim, out_dim)
    w4, b4 = linear(k4, out_dim, binary)
    g1, be1 = jnp.ones((1, hidden_dim), jnp.float32), jnp.zeros((1, hidden_dim), jnp.float32)
    g2, be2 = jnp.ones((1, hidden_dim), jnp.float32), jnp.zeros((1, hidden_dim), jnp.float32)
    g3, be3 = jnp.ones((1, out_dim), jnp.float32), jnp.zeros((1, out_dim), jnp.float32)
    return (w1, b1, g1, be1, w2, b2, g2, be2, w3, b3, g3, be3, w4, b4)


def mlp_decoder_ref(x, params):
    """Pure-JAX f32 reference for correctness checking (training-mode BN)."""
    (w1, b1, g1, be1, w2, b2, g2, be2, w3, b3, g3, be3, w4, b4) = params

    def blk(h, w, b, g, be):
        h = jnp.maximum(h @ w + b, 0.0)
        m = jnp.mean(h, axis=0, keepdims=True)
        v = jnp.mean((h - m) ** 2, axis=0, keepdims=True)
        return (h - m) / jnp.sqrt(v + EPS) * g + be

    h = blk(x, w1, b1, g1, be1)
    h = blk(h, w2, b2, g2, be2)
    h = blk(h, w3, b3, g3, be3)
    return h @ w4 + b4


if __name__ == "__main__":
    key = jax.random.PRNGKey(0)
    k_x, k_p = jax.random.split(key)

    batch, in_dim, hidden_dim, out_dim, binary = 8, 32, 32, 16, 1
    x = jax.random.normal(k_x, (batch, in_dim), jnp.float32)
    params = init_params(k_p, in_dim, hidden_dim, out_dim, binary)

    out = mlp_decoder(x, params)
    out = jax.block_until_ready(out)

    ref = mlp_decoder_ref(x, params)
    assert out.shape == (batch, binary), out.shape
    # Tolerance relaxed for bf16 MXU operands (f32 accumulation); BN re-normalizes
    # each layer so the error stays small.
    assert jnp.allclose(out, ref, atol=5e-2, rtol=5e-2), (
        f"max abs err {jnp.max(jnp.abs(out - ref))}")

    print("KERNEL_OK")
</pallas_src>

<mosaic_0001>
module attributes {stable_mosaic.version = 11 : i64} {
  func.func @mlp_decoder_kernel(%arg0: memref<8x32xbf16, #tpu.memory_space<vmem>>, %arg1: memref<96x128xbf16, #tpu.memory_space<vmem>>, %arg2: memref<16x128xf32, #tpu.memory_space<vmem>>, %arg3: memref<8x1xf32, #tpu.memory_space<vmem>>) attributes {dimension_semantics = [], scalar_prefetch = 0 : i64, scratch_operands = 0 : i64, tpu.core_type = #tpu.core_type<tc>} {
    %c0 = arith.constant 0 : index
    %c0_0 = arith.constant 0 : index
    %0 = vector.load %arg0[%c0, %c0_0] : memref<8x32xbf16, #tpu.memory_space<vmem>>, vector<8x32xbf16>
    %c0_1 = arith.constant 0 : index
    %c0_2 = arith.constant 0 : index
    %1 = vector.load %arg1[%c0_1, %c0_2] : memref<96x128xbf16, #tpu.memory_space<vmem>>, vector<32x32xbf16>
    %c0_3 = arith.constant 0 : index
    %c0_4 = arith.constant 0 : index
    %2 = vector.load %arg2[%c0_3, %c0_4] : memref<16x128xf32, #tpu.memory_space<vmem>>, vector<1x32xf32>
    %c1 = arith.constant 1 : index
    %c0_5 = arith.constant 0 : index
    %3 = vector.load %arg2[%c1, %c0_5] : memref<16x128xf32, #tpu.memory_space<vmem>>, vector<1x32xf32>
    %c2 = arith.constant 2 : index
    %c0_6 = arith.constant 0 : index
    %4 = vector.load %arg2[%c2, %c0_6] : memref<16x128xf32, #tpu.memory_space<vmem>>, vector<1x32xf32>
    %cst = arith.constant dense<0.000000e+00> : vector<8x32xf32>
    %5 = tpu.matmul %0, %1, %cst {dimension_numbers = #tpu.dot_dimension_numbers<[1], [0], [0], [1], [0, 0, 1, 1], [], []>} : vector<8x32xbf16>, vector<32x32xbf16>, vector<8x32xf32> -> vector<8x32xf32>
    %6 = vector.broadcast %2 : vector<1x32xf32> to vector<8x32xf32>
    %7 = arith.addf %5, %6 : vector<8x32xf32>
    %cst_7 = arith.constant 0.000000e+00 : f32
    %8 = vector.broadcast %cst_7 : f32 to vector<8x32xf32>
    %9 = arith.maximumf %7, %8 : vector<8x32xf32>
    %cst_8 = arith.constant dense<0.000000e+00> : vector<32xf32>
    %10 = vector.multi_reduction <add>, %9, %cst_8 [0] : vector<8x32xf32> to vector<32xf32>
    %11 = vector.shape_cast %10 : vector<32xf32> to vector<1x32xf32>
    %cst_9 = arith.constant 1.250000e-01 : f32
    %12 = vector.broadcast %cst_9 : f32 to vector<1x32xf32>
    %13 = arith.mulf %11, %12 : vector<1x32xf32>
    %14 = vector.broadcast %13 : vector<1x32xf32> to vector<8x32xf32>
    %15 = arith.subf %9, %14 : vector<8x32xf32>
    %16 = arith.mulf %15, %15 : vector<8x32xf32>
    %cst_10 = arith.constant dense<0.000000e+00> : vector<32xf32>
    %17 = vector.multi_reduction <add>, %16, %cst_10 [0] : vector<8x32xf32> to vector<32xf32>
    %18 = vector.shape_cast %17 : vector<32xf32> to vector<1x32xf32>
    %cst_11 = arith.constant 1.250000e-01 : f32
    %19 = vector.broadcast %cst_11 : f32 to vector<1x32xf32>
    %20 = arith.mulf %18, %19 : vector<1x32xf32>
    %cst_12 = arith.constant 9.99999974E-6 : f32
    %21 = vector.broadcast %cst_12 : f32 to vector<1x32xf32>
    %22 = arith.addf %20, %21 : vector<1x32xf32>
    %23 = math.rsqrt %22 : vector<1x32xf32>
    %24 = arith.mulf %23, %3 : vector<1x32xf32>
    %25 = vector.broadcast %24 : vector<1x32xf32> to vector<8x32xf32>
    %26 = arith.mulf %15, %25 : vector<8x32xf32>
    %27 = vector.broadcast %4 : vector<1x32xf32> to vector<8x32xf32>
    %28 = arith.addf %26, %27 : vector<8x32xf32>
    %29 = arith.truncf %28 : vector<8x32xf32> to vector<8x32xbf16>
    %c32 = arith.constant 32 : index
    %c0_13 = arith.constant 0 : index
    %30 = vector.load %arg1[%c32, %c0_13] : memref<96x128xbf16, #tpu.memory_space<vmem>>, vector<32x32xbf16>
    %c3 = arith.constant 3 : index
    %c0_14 = arith.constant 0 : index
    %31 = vector.load %arg2[%c3, %c0_14] : memref<16x128xf32, #tpu.memory_space<vmem>>, vector<1x32xf32>
    %c4 = arith.constant 4 : index
    %c0_15 = arith.constant 0 : index
    %32 = vector.load %arg2[%c4, %c0_15] : memref<16x128xf32, #tpu.memory_space<vmem>>, vector<1x32xf32>
    %c5 = arith.constant 5 : index
    %c0_16 = arith.constant 0 : index
    %33 = vector.load %arg2[%c5, %c0_16] : memref<16x128xf32, #tpu.memory_space<vmem>>, vector<1x32xf32>
    %cst_17 = arith.constant dense<0.000000e+00> : vector<8x32xf32>
    %34 = tpu.matmul %29, %30, %cst_17 {dimension_numbers = #tpu.dot_dimension_numbers<[1], [0], [0], [1], [0, 0, 1, 1], [], []>} : vector<8x32xbf16>, vector<32x32xbf16>, vector<8x32xf32> -> vector<8x32xf32>
    %35 = vector.broadcast %31 : vector<1x32xf32> to vector<8x32xf32>
    %36 = arith.addf %34, %35 : vector<8x32xf32>
    %cst_18 = arith.constant 0.000000e+00 : f32
    %37 = vector.broadcast %cst_18 : f32 to vector<8x32xf32>
    %38 = arith.maximumf %36, %37 : vector<8x32xf32>
    %cst_19 = arith.constant dense<0.000000e+00> : vector<32xf32>
    %39 = vector.multi_reduction <add>, %38, %cst_19 [0] : vector<8x32xf32> to vector<32xf32>
    %40 = vector.shape_cast %39 : vector<32xf32> to vector<1x32xf32>
    %cst_20 = arith.constant 1.250000e-01 : f32
    %41 = vector.broadcast %cst_20 : f32 to vector<1x32xf32>
    %42 = arith.mulf %40, %41 : vector<1x32xf32>
    %43 = vector.broadcast %42 : vector<1x32xf32> to vector<8x32xf32>
    %44 = arith.subf %38, %43 : vector<8x32xf32>
    %45 = arith.mulf %44, %44 : vector<8x32xf32>
    %cst_21 = arith.constant dense<0.000000e+00> : vector<32xf32>
    %46 = vector.multi_reduction <add>, %45, %cst_21 [0] : vector<8x32xf32> to vector<32xf32>
    %47 = vector.shape_cast %46 : vector<32xf32> to vector<1x32xf32>
    %cst_22 = arith.constant 1.250000e-01 : f32
    %48 = vector.broadcast %cst_22 : f32 to vector<1x32xf32>
    %49 = arith.mulf %47, %48 : vector<1x32xf32>
    %cst_23 = arith.constant 9.99999974E-6 : f32
    %50 = vector.broadcast %cst_23 : f32 to vector<1x32xf32>
    %51 = arith.addf %49, %50 : vector<1x32xf32>
    %52 = math.rsqrt %51 : vector<1x32xf32>
    %53 = arith.mulf %52, %32 : vector<1x32xf32>
    %54 = vector.broadcast %53 : vector<1x32xf32> to vector<8x32xf32>
    %55 = arith.mulf %44, %54 : vector<8x32xf32>
    %56 = vector.broadcast %33 : vector<1x32xf32> to vector<8x32xf32>
    %57 = arith.addf %55, %56 : vector<8x32xf32>
    %58 = arith.truncf %57 : vector<8x32xf32> to vector<8x32xbf16>
    %c64 = arith.constant 64 : index
    %c0_24 = arith.constant 0 : index
    %59 = vector.load %arg1[%c64, %c0_24] : memref<96x128xbf16, #tpu.memory_space<vmem>>, vector<32x16xbf16>
    %c6 = arith.constant 6 : index
    %c0_25 = arith.constant 0 : index
    %60 = vector.load %arg2[%c6, %c0_25] : memref<16x128xf32, #tpu.memory_space<vmem>>, vector<1x16xf32>
    %c7 = arith.constant 7 : index
    %c0_26 = arith.constant 0 : index
    %61 = vector.load %arg2[%c7, %c0_26] : memref<16x128xf32, #tpu.memory_space<vmem>>, vector<1x16xf32>
    %c8 = arith.constant 8 : index
    %c0_27 = arith.constant 0 : index
    %62 = vector.load %arg2[%c8, %c0_27] : memref<16x128xf32, #tpu.memory_space<vmem>>, vector<1x16xf32>
    %cst_28 = arith.constant dense<0.000000e+00> : vector<8x16xf32>
    %63 = tpu.matmul %58, %59, %cst_28 {dimension_numbers = #tpu.dot_dimension_numbers<[1], [0], [0], [1], [0, 0, 1, 1], [], []>} : vector<8x32xbf16>, vector<32x16xbf16>, vector<8x16xf32> -> vector<8x16xf32>
    %64 = vector.broadcast %60 : vector<1x16xf32> to vector<8x16xf32>
    %65 = arith.addf %63, %64 : vector<8x16xf32>
    %cst_29 = arith.constant 0.000000e+00 : f32
    %66 = vector.broadcast %cst_29 : f32 to vector<8x16xf32>
    %67 = arith.maximumf %65, %66 : vector<8x16xf32>
    %cst_30 = arith.constant dense<0.000000e+00> : vector<16xf32>
    %68 = vector.multi_reduction <add>, %67, %cst_30 [0] : vector<8x16xf32> to vector<16xf32>
    %69 = vector.shape_cast %68 : vector<16xf32> to vector<1x16xf32>
    %cst_31 = arith.constant 1.250000e-01 : f32
    %70 = vector.broadcast %cst_31 : f32 to vector<1x16xf32>
    %71 = arith.mulf %69, %70 : vector<1x16xf32>
    %72 = vector.broadcast %71 : vector<1x16xf32> to vector<8x16xf32>
    %73 = arith.subf %67, %72 : vector<8x16xf32>
    %74 = arith.mulf %73, %73 : vector<8x16xf32>
    %cst_32 = arith.constant dense<0.000000e+00> : vector<16xf32>
    %75 = vector.multi_reduction <add>, %74, %cst_32 [0] : vector<8x16xf32> to vector<16xf32>
    %76 = vector.shape_cast %75 : vector<16xf32> to vector<1x16xf32>
    %cst_33 = arith.constant 1.250000e-01 : f32
    %77 = vector.broadcast %cst_33 : f32 to vector<1x16xf32>
    %78 = arith.mulf %76, %77 : vector<1x16xf32>
    %cst_34 = arith.constant 9.99999974E-6 : f32
    %79 = vector.broadcast %cst_34 : f32 to vector<1x16xf32>
    %80 = arith.addf %78, %79 : vector<1x16xf32>
    %81 = math.rsqrt %80 : vector<1x16xf32>
    %82 = arith.mulf %81, %61 : vector<1x16xf32>
    %83 = vector.broadcast %82 : vector<1x16xf32> to vector<8x16xf32>
    %84 = arith.mulf %73, %83 : vector<8x16xf32>
    %85 = vector.broadcast %62 : vector<1x16xf32> to vector<8x16xf32>
    %86 = arith.addf %84, %85 : vector<8x16xf32>
    %c10 = arith.constant 10 : index
    %c0_35 = arith.constant 0 : index
    %87 = vector.load %arg2[%c10, %c0_35] : memref<16x128xf32, #tpu.memory_space<vmem>>, vector<1x16xf32>
    %c9 = arith.constant 9 : index
    %c0_36 = arith.constant 0 : index
    %88 = vector.load %arg2[%c9, %c0_36] : memref<16x128xf32, #tpu.memory_space<vmem>>, vector<1x1xf32>
    %89 = vector.broadcast %87 : vector<1x16xf32> to vector<8x16xf32>
    %90 = arith.mulf %86, %89 : vector<8x16xf32>
    %cst_37 = arith.constant dense<0.000000e+00> : vector<8xf32>
    %91 = vector.multi_reduction <add>, %90, %cst_37 [1] : vector<8x16xf32> to vector<8xf32>
    %92 = vector.shape_cast %91 : vector<8xf32> to vector<8x1xf32>
    %93 = vector.broadcast %88 : vector<1x1xf32> to vector<8x1xf32>
    %94 = arith.addf %92, %93 : vector<8x1xf32>
    %c0_38 = arith.constant 0 : index
    %c0_39 = arith.constant 0 : index
    %95 = vector.load %arg3[%c0_38, %c0_39] : memref<8x1xf32, #tpu.memory_space<vmem>>, vector<8x1xf32>
    tpu.vector_store %arg3[%c0_38, %c0_39], %94 {strides = array<i32>} : memref<8x1xf32, #tpu.memory_space<vmem>>, vector<8x1xf32>,
    return
  }
}

</mosaic_0001>

<llo_original>
// kernel: mlp_decoder.1
$region0: #{mlp_decoder.1}
  #allocation0 [shape = 'u32[]', space=smem, size = 0x4, offset = 0x4, fixed_abs, tag = 'smem constant byte address 0x4 - core index']
  #allocation1 [shape = 'u32[144,128]{1,0:T(1,128)}', space=vmem, size = 0x12000, scoped, tag = 'internal scratch']
  %s0 = inlined_call_operand.vmem [shape: bf16[8,32], index: 0, kind: input, shape index: {}]
  %s1 = inlined_call_operand.vmem [shape: bf16[96,128], index: 1, kind: input, shape index: {}]
  %s2 = inlined_call_operand.vmem [shape: f32[16,128], index: 2, kind: input, shape index: {}]
  %s3 = inlined_call_operand.vmem [shape: f32[8,1], index: 3, kind: output, shape index: {}]
  %s4 = sld [smem:[#allocation0]]
  $region22: #{mlp_decoder.1} parent=0
    _
  %s6 = ssub.s32 1, %s4
  %s7 = scalar_select 0, %s6, %s4
  // Predicated region
  $region2: #{mlp_decoder.1} parent=0 // pred_check
    _
  $region3: #{mlp_decoder.1} parent=0 // pred_check_branch
    %9 = sbr.rel (0) target = $region5
  $region4: #{mlp_decoder.1} parent=0 // pred_region
    _
  $region5: #{mlp_decoder.1} parent=0 // pred_fallthru
    _
  // Predicated region
  $region6: #{mlp_decoder.1} parent=0 // pred_check
    _
  $region7: #{mlp_decoder.1} parent=0 // pred_check_branch
    %11 = sbr.rel (0) target = $region9
  $region8: #{mlp_decoder.1} parent=0 // pred_region
    _
  $region9: #{mlp_decoder.1} parent=0 // pred_fallthru
    _
  // Predicated region
  $region10: #{mlp_decoder.1} parent=0 // pred_check
    _
  $region11: #{mlp_decoder.1} parent=0 // pred_check_branch
    %13 = sbr.rel (0) target = $region13
  $region12: #{mlp_decoder.1} parent=0 // pred_region
    _
  $region13: #{mlp_decoder.1} parent=0 // pred_fallthru
    _
  %v15 = vld [vmem:[%s0] sm:$0xf]
  %v16 = vld [vmem:[%s1] sm:$0xf]
  %v17 = vld [vmem:[%s1 + $0x4] sm:$0xf]
  %v18 = vld [vmem:[%s1 + $0x8] sm:$0xf]
  %v19 = vld [vmem:[%s1 + $0xc] sm:$0xf]
  %v20 = vld [vmem:[%s2] sm:$0x1]
  %v21 = vld [vmem:[%s2 + $0x1] sm:$0x1]
  %v22 = vld [vmem:[%s2 + $0x2] sm:$0x1]
  %v23 = vlaneseq
  %v24 = vshrl.u32 %v23, 7
  %v25 = vsub.s32 0, %v24
  %v26 = vrot.slane %v20, %v25
  %v31 = vunpack.c.l.b16 %v16
  %v32 = vunpack.c.l.b16 %v17
  %v33 = vunpack.c.l.b16 %v18
  %v34 = vunpack.c.l.b16 %v19
  %v35 = vpack.c.b16 %v32, %v31
  %v36 = vpack.c.b16 %v34, %v33
  %vm39 = vcmask 261120
  %v41 = vsel %vm39, %v15, 0
  %43 = vmatprep.subr.bf16.mxu0 0
  %44 = vmatpush1.bf16.msra.mxu0 %v35
  %45 = vmatprep.subr.bf16.mxu0 0
  %46 = vmatpush1.bf16.msra.mxu0 %v36
  %47 = vmatprep.subr.bf16.mxu0 0
  %48 = vmatpush1.bf16.msra.mxu0 0
  %49 = vmatprep.subr.bf16.mxu0 0
  %50 = vmatpush1.bf16.msra.mxu0 0
  %51 = vmatprep.subr.bf16.mxu0 0
  %52 = vmatpush1.bf16.msra.mxu0 0
  %53 = vmatprep.subr.bf16.mxu0 0
  %54 = vmatpush1.bf16.msra.mxu0 0
  %55 = vmatprep.subr.bf16.mxu0 0
  %56 = vmatpush1.bf16.msra.mxu0 0
  %57 = vmatprep.subr.bf16.mxu0 0
  %58 = vmatpush1.bf16.msra.mxu0 0
  %59 = vmatprep.subr.bf16.mxu0 0
  %60 = vmatpush1.bf16.msra.mxu0 0
  %61 = vmatprep.subr.bf16.mxu0 0
  %62 = vmatpush1.bf16.msra.mxu0 0
  %63 = vmatprep.subr.bf16.mxu0 0
  %64 = vmatpush1.bf16.msra.mxu0 0
  %65 = vmatprep.subr.bf16.mxu0 0
  %66 = vmatpush1.bf16.msra.mxu0 0
  %67 = vmatprep.subr.bf16.mxu0 0
  %68 = vmatpush1.bf16.msra.mxu0 0
  %69 = vmatprep.subr.bf16.mxu0 0
  %70 = vmatpush1.bf16.msra.mxu0 0
  %71 = vmatprep.subr.bf16.mxu0 0
  %72 = vmatpush1.bf16.msra.mxu0 0
  %73 = vmatprep.subr.bf16.mxu0 0
  %74 = vmatpush1.bf16.msra.mxu0 0
  %75 = vmatprep.mubr.bf16.mxu0 0
  %76 = vmatmul.mubr.bf16.gmra.mrb[0].mxu0 %v41
  %v77 = vpop.f32.mrb[0].mxu0
  %v78 = vadd.f32 %v26, %v77
  %v79 = vpop.f32.mrb[0].mxu0
  %v80 = vpop.f32.mrb[0].mxu0
  %v81 = vpop.f32.mrb[0].mxu0
  %82 = vdwg.mxu0
  %v83 = vmax.f32 %v78, 0.0
  %v84 = vsel %vm39, %v83, 0.0
  %v85 = vrot.slane %v84, 4
  %v86 = vadd.f32 %v84, %v85
  %v87 = vrot.slane %v86, 2
  %v88 = vadd.f32 %v86, %v87
  %v89 = vrot.slane %v88, 1
  %v90 = vadd.f32 %v88, %v89
  %v91 = vmul.f32 %v90, 0.125
  %v92 = vsub.f32 %v83, %v91
  %v93 = vmul.f32 %v92, %v92
  %v94 = vsel %vm39, %v93, 0.0
  %v95 = vrot.slane %v94, 4
  %v96 = vadd.f32 %v94, %v95
  %v97 = vrot.slane %v96, 2
  %v98 = vadd.f32 %v96, %v97
  %v99 = vrot.slane %v98, 1
  %v100 = vadd.f32 %v98, %v99
  %v101 = vmul.f32 %v100, 0.125
  %v102 = vadd.f32 %v101, 1e-05
  %v103 = vrsqrt.pop %v102
  %v104 = vmul.f32 %v103, %v21
  %v105 = vlaneseq
  %v106 = vshrl.u32 %v105, 7
  %v107 = vsub.s32 0, %v106
  %v108 = vrot.slane %v104, %v107
  %v109 = vmul.f32 %v92, %v108
  %v110 = vlaneseq
  %v111 = vshrl.u32 %v110, 7
  %v112 = vsub.s32 0, %v111
  %v113 = vrot.slane %v22, %v112
  %v114 = vadd.f32 %v109, %v113
  %v115 = vpack.c.bf16 %v114, %v114
  %v116 = vld [vmem:[%s1 + $0x10] sm:$0xf]
  %v117 = vld [vmem:[%s1 + $0x14] sm:$0xf]
  %v118 = vld [vmem:[%s1 + $0x18] sm:$0xf]
  %v119 = vld [vmem:[%s1 + $0x1c] sm:$0xf]
  %v120 = vld [vmem:[%s2 + $0x3] sm:$0x1]
  %v121 = vld [vmem:[%s2 + $0x4] sm:$0x1]
  %v122 = vld [vmem:[%s2 + $0x5] sm:$0x1]
  %v123 = vlaneseq
  %v124 = vshrl.u32 %v123, 7
  %v125 = vsub.s32 0, %v124
  %v126 = vrot.slane %v120, %v125
  %v131 = vunpack.c.l.b16 %v116
  %v132 = vunpack.c.l.b16 %v117
  %v133 = vunpack.c.l.b16 %v118
  %v134 = vunpack.c.l.b16 %v119
  %v135 = vpack.c.b16 %v132, %v131
  %v136 = vpack.c.b16 %v134, %v133
  %v140 = vsel %vm39, %v115, 0
  %142 = vmatprep.subr.bf16.mxu0 0
  %143 = vmatpush1.bf16.msra.mxu0 %v135
  %144 = vmatprep.subr.bf16.mxu0 0
  %145 = vmatpush1.bf16.msra.mxu0 %v136
  %146 = vmatprep.subr.bf16.mxu0 0
  %147 = vmatpush1.bf16.msra.mxu0 0
  %148 = vmatprep.subr.bf16.mxu0 0
  %149 = vmatpush1.bf16.msra.mxu0 0
  %150 = vmatprep.subr.bf16.mxu0 0
  %151 = vmatpush1.bf16.msra.mxu0 0
  %152 = vmatprep.subr.bf16.mxu0 0
  %153 = vmatpush1.bf16.msra.mxu0 0
  %154 = vmatprep.subr.bf16.mxu0 0
  %155 = vmatpush1.bf16.msra.mxu0 0
  %156 = vmatprep.subr.bf16.mxu0 0
  %157 = vmatpush1.bf16.msra.mxu0 0
  %158 = vmatprep.subr.bf16.mxu0 0
  %159 = vmatpush1.bf16.msra.mxu0 0
  %160 = vmatprep.subr.bf16.mxu0 0
  %161 = vmatpush1.bf16.msra.mxu0 0
  %162 = vmatprep.subr.bf16.mxu0 0
  %163 = vmatpush1.bf16.msra.mxu0 0
  %164 = vmatprep.subr.bf16.mxu0 0
  %165 = vmatpush1.bf16.msra.mxu0 0
  %166 = vmatprep.subr.bf16.mxu0 0
  %167 = vmatpush1.bf16.msra.mxu0 0
  %168 = vmatprep.subr.bf16.mxu0 0
  %169 = vmatpush1.bf16.msra.mxu0 0
  %170 = vmatprep.subr.bf16.mxu0 0
  %171 = vmatpush1.bf16.msra.mxu0 0
  %172 = vmatprep.subr.bf16.mxu0 0
  %173 = vmatpush1.bf16.msra.mxu0 0
  %174 = vmatprep.mubr.bf16.mxu0 0
  %175 = vmatmul.mubr.bf16.gmra.mrb[0].mxu0 %v140
  %v176 = vpop.f32.mrb[0].mxu0
  %v177 = vadd.f32 %v126, %v176
  %v178 = vpop.f32.mrb[0].mxu0
  %v179 = vpop.f32.mrb[0].mxu0
  %v180 = vpop.f32.mrb[0].mxu0
  %181 = vdwg.mxu0
  %v182 = vmax.f32 %v177, 0.0
  %v183 = vsel %vm39, %v182, 0.0
  %v184 = vrot.slane %v183, 4
  %v185 = vadd.f32 %v183, %v184
  %v186 = vrot.slane %v185, 2
  %v187 = vadd.f32 %v185, %v186
  %v188 = vrot.slane %v187, 1
  %v189 = vadd.f32 %v187, %v188
  %v190 = vmul.f32 %v189, 0.125
  %v191 = vsub.f32 %v182, %v190
  %v192 = vmul.f32 %v191, %v191
  %v193 = vsel %vm39, %v192, 0.0
  %v194 = vrot.slane %v193, 4
  %v195 = vadd.f32 %v193, %v194
  %v196 = vrot.slane %v195, 2
  %v197 = vadd.f32 %v195, %v196
  %v198 = vrot.slane %v197, 1
  %v199 = vadd.f32 %v197, %v198
  %v200 = vmul.f32 %v199, 0.125
  %v201 = vadd.f32 %v200, 1e-05
  %v202 = vrsqrt.pop %v201
  %v203 = vmul.f32 %v202, %v121
  %v204 = vlaneseq
  %v205 = vshrl.u32 %v204, 7
  %v206 = vsub.s32 0, %v205
  %v207 = vrot.slane %v203, %v206
  %v208 = vmul.f32 %v191, %v207
  %v209 = vlaneseq
  %v210 = vshrl.u32 %v209, 7
  %v211 = vsub.s32 0, %v210
  %v212 = vrot.slane %v122, %v211
  %v213 = vadd.f32 %v208, %v212
  %v214 = vpack.c.bf16 %v213, %v213
  %v215 = vld [vmem:[%s1 + $0x20] sm:$0xf]
  %v216 = vld [vmem:[%s1 + $0x24] sm:$0xf]
  %v217 = vld [vmem:[%s1 + $0x28] sm:$0xf]
  %v218 = vld [vmem:[%s1 + $0x2c] sm:$0xf]
  %v219 = vld [vmem:[%s2 + $0x6] sm:$0x1]
  %v220 = vld [vmem:[%s2 + $0x7] sm:$0x1]
  %v221 = vld [vmem:[%s2 + $0x8] sm:$0x1]
  %v222 = vlaneseq
  %v223 = vshrl.u32 %v222, 7
  %v224 = vsub.s32 0, %v223
  %v225 = vrot.slane %v219, %v224
  %v230 = vunpack.c.l.b16 %v215
  %v231 = vunpack.c.l.b16 %v216
  %v232 = vunpack.c.l.b16 %v217
  %v233 = vunpack.c.l.b16 %v218
  %v234 = vpack.c.b16 %v231, %v230
  %v235 = vpack.c.b16 %v233, %v232
  %v239 = vsel %vm39, %v214, 0
  %241 = vmatprep.subr.bf16.mxu0 0
  %242 = vmatpush1.bf16.msra.mxu0 %v234
  %243 = vmatprep.subr.bf16.mxu0 0
  %244 = vmatpush1.bf16.msra.mxu0 %v235
  %245 = vmatprep.subr.bf16.mxu0 0
  %246 = vmatpush1.bf16.msra.mxu0 0
  %247 = vmatprep.subr.bf16.mxu0 0
  %248 = vmatpush1.bf16.msra.mxu0 0
  %249 = vmatprep.subr.bf16.mxu0 0
  %250 = vmatpush1.bf16.msra.mxu0 0
  %251 = vmatprep.subr.bf16.mxu0 0
  %252 = vmatpush1.bf16.msra.mxu0 0
  %253 = vmatprep.subr.bf16.mxu0 0
  %254 = vmatpush1.bf16.msra.mxu0 0
  %255 = vmatprep.subr.bf16.mxu0 0
  %256 = vmatpush1.bf16.msra.mxu0 0
  %257 = vmatprep.subr.bf16.mxu0 0
  %258 = vmatpush1.bf16.msra.mxu0 0
  %259 = vmatprep.subr.bf16.mxu0 0
  %260 = vmatpush1.bf16.msra.mxu0 0
  %261 = vmatprep.subr.bf16.mxu0 0
  %262 = vmatpush1.bf16.msra.mxu0 0
  %263 = vmatprep.subr.bf16.mxu0 0
  %264 = vmatpush1.bf16.msra.mxu0 0
  %265 = vmatprep.subr.bf16.mxu0 0
  %266 = vmatpush1.bf16.msra.mxu0 0
  %267 = vmatprep.subr.bf16.mxu0 0
  %268 = vmatpush1.bf16.msra.mxu0 0
  %269 = vmatprep.subr.bf16.mxu0 0
  %270 = vmatpush1.bf16.msra.mxu0 0
  %271 = vmatprep.subr.bf16.mxu0 0
  %272 = vmatpush1.bf16.msra.mxu0 0
  %273 = vmatprep.mubr.bf16.mxu0 0
  %274 = vmatmul.mubr.bf16.gmra.mrb[0].mxu0 %v239
  %v275 = vpop.f32.mrb[0].mxu0
  %v276 = vadd.f32 %v225, %v275
  %v277 = vpop.f32.mrb[0].mxu0
  %v278 = vpop.f32.mrb[0].mxu0
  %v279 = vpop.f32.mrb[0].mxu0
  %280 = vdwg.mxu0
  %v281 = vmax.f32 %v276, 0.0
  %vm282 = vcmask 130048
  %v283 = vsel %vm282, %v281, 0.0
  %v284 = vrot.slane %v283, 4
  %v285 = vadd.f32 %v283, %v284
  %v286 = vrot.slane %v285, 2
  %v287 = vadd.f32 %v285, %v286
  %v288 = vrot.slane %v287, 1
  %v289 = vadd.f32 %v287, %v288
  %v290 = vmul.f32 %v289, 0.125
  %v291 = vsub.f32 %v281, %v290
  %v292 = vmul.f32 %v291, %v291
  %v293 = vsel %vm282, %v292, 0.0
  %v294 = vrot.slane %v293, 4
  %v295 = vadd.f32 %v293, %v294
  %v296 = vrot.slane %v295, 2
  %v297 = vadd.f32 %v295, %v296
  %v298 = vrot.slane %v297, 1
  %v299 = vadd.f32 %v297, %v298
  %v300 = vmul.f32 %v299, 0.125
  %v301 = vadd.f32 %v300, 1e-05
  %v302 = vrsqrt.pop %v301
  %v303 = vmul.f32 %v302, %v220
  %v304 = vlaneseq
  %v305 = vshrl.u32 %v304, 7
  %v306 = vsub.s32 0, %v305
  %v307 = vrot.slane %v303, %v306
  %v308 = vmul.f32 %v291, %v307
  %v309 = vlaneseq
  %v310 = vshrl.u32 %v309, 7
  %v311 = vsub.s32 0, %v310
  %v312 = vrot.slane %v221, %v311
  %v313 = vadd.f32 %v308, %v312
  %v314 = vld [vmem:[%s2 + $0xa] sm:$0x1]
  %v315 = vld [vmem:[%s2 + $0x9] sm:$0x1]
  %v316 = vlaneseq
  %v317 = vshrl.u32 %v316, 7
  %v318 = vsub.s32 0, %v317
  %v319 = vrot.slane %v314, %v318
  %v320 = vmul.f32 %v313, %v319
  %v321 = vsel %vm282, %v320, 0.0
  %322 = vadd.xlane.f32.xlu0 %v321
  %v323 = vpop.xlane.xlu0 %322
  %v324 = vlaneseq
  %v325 = vshrl.u32 %v324, 7
  %v326 = vsub.s32 0, %v325
  %v327 = vrot.slane %v315, %v326
  %v328 = vadd.f32 %v323, %v327
  %vm329 = vcmask 7168
  %330 = vst.msk [vmem:[%s3] sm:$0xff] %vm329, %v328
  // Predicated region
  $region14: #{mlp_decoder.1} parent=0 // pred_check
    _
  $region15: #{mlp_decoder.1} parent=0 // pred_check_branch
    %332 = sbr.rel (0) target = $region17
  $region16: #{mlp_decoder.1} parent=0 // pred_region
    _
  $region17: #{mlp_decoder.1} parent=0 // pred_fallthru
    _
  // Predicated region
  $region18: #{mlp_decoder.1} parent=0 // pred_check
    _
  $region19: #{mlp_decoder.1} parent=0 // pred_check_branch
    %334 = sbr.rel (0) target = $region21
  $region20: #{mlp_decoder.1} parent=0 // pred_region
    _
  $region21: #{mlp_decoder.1} parent=0 // pred_fallthru
    _

</llo_original>
